<compile_context>
chip_gen: v7x
topology: tpu7x:2x2x1
jax: 0.10.0
libtpu: 0.0.40
codegen_flags: <defaults>
</compile_context>

<pallas_src>
import functools

import jax
import jax.numpy as jnp
from jax.experimental import pallas as pl
from jax.experimental.pallas import tpu as pltpu


def _conv1x1_relu_gap_kernel(x_ref, w_ref, b_ref, o_ref, acc_ref, *,
                             bt: int, tp: int, hw: int, mask_tail: bool):
    """One (batch_block, spatial_tile) step of sum_p relu(W x_p + b) (W,b pre-scaled by 1/HW)."""
    s = pl.program_id(1)

    @pl.when(s == 0)
    def _():
        acc_ref[...] = jnp.zeros_like(acc_ref)

    w = w_ref[...]                                              # (O, C), resident
    b_col = jnp.transpose(b_ref[...]).astype(jnp.float32)       # (1, O) -> (O, 1)

    if mask_tail:
        pos = s * tp + jax.lax.broadcasted_iota(jnp.int32, (1, tp), 1)
        lane_ok = pos < hw                                       # (1, tp) valid-lane mask

    for i in range(bt):                                          # short static unroll
        z = jnp.dot(w, x_ref[i], preferred_element_type=jnp.float32)   # (O, tp) on MXU
        z = jnp.maximum(z + b_col, 0.0)                           # bias + ReLU
        if mask_tail:
            z = jnp.where(lane_ok, z, 0.0)                        # zero padded spatial lanes
        acc_ref[i] = acc_ref[i] + z                               # elementwise accumulate (VALU)

    @pl.when(s == pl.num_programs(1) - 1)
    def _():
        # Single cross-lane reduction per output block; lane-dense (Bt, 1, O) store.
        r = jnp.sum(acc_ref[...], axis=2)                         # (Bt, O)
        o_ref[...] = r[:, None, :].astype(o_ref.dtype)


def _pick_batch_tile(b: int, cap: int = 8) -> int:
    """Largest divisor of b that is <= cap (keeps blocks legal and grid exact)."""
    for bt in range(min(b, cap), 0, -1):
        if b % bt == 0:
            return bt
    return 1


def _spatial_plan(hw: int, c: int, bt: int, itemsize: int,
                  block_budget_bytes: int = 2 * 1024 * 1024):
    """Pick spatial tile tp and padded spatial extent hw_pad under a per-buffer VMEM budget."""
    col_bytes = max(1, bt * c * itemsize)
    max_cols = max(128, block_budget_bytes // col_bytes)
    if hw <= max_cols:
        return hw, hw                       # single full-extent tile: always legal, no padding
    tp = (max_cols // 128) * 128            # lane-aligned tile for multi-tile streaming
    hw_pad = ((hw + tp - 1) // tp) * tp
    return tp, hw_pad


def pallas_conv1x1_relu_gap(x_bchw, w_oc, b_o):
    """y[b, o] = mean_{h,w} relu(sum_c w[o,c] * x[b,c,h,w] + b[o])."""
    B, C, H, W = x_bchw.shape
    O = w_oc.shape[0]
    assert w_oc.shape == (O, C) and b_o.shape == (O,)
    HW = H * W

    # Fold the 1/HW mean into the affine params (relu(a)/n == relu(a/n), n > 0) and
    # match the activation dtype (bf16 activations -> bf16 MXU + half HBM traffic).
    inv_hw = 1.0 / float(HW)
    w_s = (w_oc.astype(jnp.float32) * inv_hw).astype(x_bchw.dtype)                   # (O, C)
    b_s = (b_o.astype(jnp.float32) * inv_hw).reshape(1, O).astype(x_bchw.dtype)      # (1, O)

    bt = _pick_batch_tile(B)
    tp, hw_pad = _spatial_plan(HW, C, bt, jnp.dtype(x_bchw.dtype).itemsize)
    mask_tail = hw_pad != HW

    x3 = x_bchw.reshape(B, C, HW)            # free view of NCHW; spatial lands on lanes
    if mask_tail:
        x3 = jnp.pad(x3, ((0, 0), (0, 0), (0, hw_pad - HW)))

    n_sp = hw_pad // tp
    kernel = functools.partial(_conv1x1_relu_gap_kernel,
                               bt=bt, tp=tp, hw=HW, mask_tail=mask_tail)

    out = pl.pallas_call(
        kernel,
        out_shape=jax.ShapeDtypeStruct((B, 1, O), x_bchw.dtype),
        grid_spec=pltpu.PrefetchScalarGridSpec(
            num_scalar_prefetch=0,
            grid=(B // bt, n_sp),
            in_specs=[
                pl.BlockSpec((bt, C, tp), lambda b, s: (b, 0, s)),   # streamed activations
                # TODO(synk): pipeline_mode=pl.Buffered(1) on the two resident specs below
                # would drop their unused second pipeline buffer (pure VMEM saving).
                pl.BlockSpec((O, C), lambda b, s: (0, 0)),           # resident weight
                pl.BlockSpec((1, O), lambda b, s: (0, 0)),           # resident lane-dense bias
            ],
            out_specs=pl.BlockSpec((bt, 1, O), lambda b, s: (b, 0, 0)),
            scratch_shapes=[pltpu.VMEM((bt, O, tp), jnp.float32)],   # deferred-reduce accumulator
        ),
        compiler_params=pltpu.CompilerParams(
            # TODO(synk): verify the batch axis is split across both v7x TensorCores;
            # fall back to CORE_PARALLEL / core_map if plain "parallel" does not shard.
            dimension_semantics=("parallel", "arbitrary"),
            vmem_limit_bytes=48 * 1024 * 1024,
        ),
    )(x3, w_s, b_s)
    return out.reshape(B, O)  # torch.flatten after the (1,1) adaptive pool


def squeezenet_classifier_forward(x_nchw, params, out_channels: int):
    """Forward pass of SqueezeNetClassifier (eval mode). x_nchw: (B, C, H, W)."""
    if out_channels <= 0:
        return x_nchw
    # Dropout: identity in eval/inference mode.
    return pallas_conv1x1_relu_gap(x_nchw, params["w"], params["b"])


def init_params(key, in_channels: int, out_channels: int):
    """Deterministic synthetic Conv2d(1x1) weights (PyTorch default uniform init)."""
    k1, k2 = jax.random.split(key)
    bound = 1.0 / jnp.sqrt(jnp.float32(in_channels))  # fan_in = C * 1 * 1

    def u(k, shape):
        return jax.random.uniform(k, shape, jnp.float32, -bound, bound)

    return {
        "w": u(k1, (out_channels, in_channels)),  # conv weight (O, C, 1, 1) squeezed
        "b": u(k2, (out_channels,)),
    }


def reference_forward(x_nchw, params):
    y = jnp.einsum("bchw,oc->bohw", x_nchw, params["w"])
    y = y + params["b"][None, :, None, None]
    y = jnp.maximum(y, 0.0)
    return jnp.mean(y, axis=(2, 3))


if __name__ == "__main__":
    in_channels = 4
    out_channels = 16
    batch = 2
    spatial = 16

    key = jax.random.PRNGKey(0)
    kx, kp = jax.random.split(key)
    x = jax.random.normal(kx, (batch, in_channels, spatial, spatial), jnp.float32)
    params = init_params(kp, in_channels, out_channels)

    fwd = jax.jit(
        functools.partial(squeezenet_classifier_forward, out_channels=out_channels)
    )
    out = fwd(x, params)
    out = jax.block_until_ready(out)

    ref = reference_forward(x, params)
    assert out.shape == (batch, out_channels), out.shape
    assert jnp.allclose(out, ref, atol=1e-3, rtol=1e-3), (
        float(jnp.max(jnp.abs(out - ref)))
    )
    print("KERNEL_OK")
</pallas_src>

<mosaic_0001>
module attributes {stable_mosaic.version = 11 : i64} {
  func.func @_conv1x1_relu_gap_kernel(%arg0: i32, %arg1: i32, %arg2: memref<2x4x256xf32, #tpu.memory_space<vmem>>, %arg3: memref<16x4xf32, #tpu.memory_space<vmem>>, %arg4: memref<1x16xf32, #tpu.memory_space<vmem>>, %arg5: memref<2x1x16xf32, #tpu.memory_space<vmem>>, %arg6: memref<2x16x256xf32, #tpu.memory_space<vmem>>) attributes {dimension_semantics = [#tpu.dimension_semantics<parallel>, #tpu.dimension_semantics<arbitrary>], iteration_bounds = array<i64: 1, 1>, scalar_prefetch = 0 : i64, scratch_operands = 1 : i64, tpu.core_type = #tpu.core_type<tc>, window_params = [{transform_indices = @transform_0, window_bounds = array<i64: 2, 4, 256>}, {pipeline_mode = #tpu.pipeline_mode<synchronous>, transform_indices = @transform_1, window_bounds = array<i64: 16, 4>}, {pipeline_mode = #tpu.pipeline_mode<synchronous>, transform_indices = @transform_2, window_bounds = array<i64: 1, 16>}, {transform_indices = @transform_3, window_bounds = array<i64: 2, 1, 16>}]} {
    %c0_i32 = arith.constant 0 : i32
    %0 = arith.cmpi eq, %arg1, %c0_i32 : i32
    %1 = arith.extui %0 : i1 to i32
    %c0_i32_0 = arith.constant 0 : i32
    %2 = arith.cmpi ne, %1, %c0_i32_0 : i32
    scf.if %2 {
      %cst_26 = arith.constant 0.000000e+00 : f32
      %35 = vector.broadcast %cst_26 : f32 to vector<2x16x256xf32>
      %c0_27 = arith.constant 0 : index
      %c0_28 = arith.constant 0 : index
      %c0_29 = arith.constant 0 : index
      %36 = vector.load %arg6[%c0_27, %c0_28, %c0_29] : memref<2x16x256xf32, #tpu.memory_space<vmem>>, vector<2x16x256xf32>
      tpu.vector_store %arg6[%c0_27, %c0_28, %c0_29], %35 {strides = array<i32>} : memref<2x16x256xf32, #tpu.memory_space<vmem>>, vector<2x16x256xf32>,
    } else {
    }
    %c0 = arith.constant 0 : index
    %c0_1 = arith.constant 0 : index
    %3 = vector.load %arg3[%c0, %c0_1] : memref<16x4xf32, #tpu.memory_space<vmem>>, vector<16x4xf32>
    %c0_2 = arith.constant 0 : index
    %c0_3 = arith.constant 0 : index
    %4 = vector.load %arg4[%c0_2, %c0_3] : memref<1x16xf32, #tpu.memory_space<vmem>>, vector<1x16xf32>
    %5 = tpu.transpose %4, [1, 0] : vector<1x16xf32> -> vector<16x1xf32>
    %c0_4 = arith.constant 0 : index
    %c0_5 = arith.constant 0 : index
    %c0_6 = arith.constant 0 : index
    %6 = vector.load %arg2[%c0_4, %c0_5, %c0_6] : memref<2x4x256xf32, #tpu.memory_space<vmem>>, vector<1x4x256xf32>
    %7 = vector.shape_cast %6 : vector<1x4x256xf32> to vector<4x256xf32>
    %cst = arith.constant dense<0.000000e+00> : vector<16x256xf32>
    %8 = tpu.matmul %3, %7, %cst {dimension_numbers = #tpu.dot_dimension_numbers<[1], [0], [0], [1], [0, 0, 1, 1], [], []>} : vector<16x4xf32>, vector<4x256xf32>, vector<16x256xf32> -> vector<16x256xf32>
    %9 = vector.broadcast %5 : vector<16x1xf32> to vector<16x256xf32>
    %10 = arith.addf %8, %9 : vector<16x256xf32>
    %cst_7 = arith.constant 0.000000e+00 : f32
    %11 = vector.broadcast %cst_7 : f32 to vector<16x256xf32>
    %12 = arith.maximumf %10, %11 : vector<16x256xf32>
    %c0_8 = arith.constant 0 : index
    %c0_9 = arith.constant 0 : index
    %c0_10 = arith.constant 0 : index
    %13 = vector.load %arg6[%c0_8, %c0_9, %c0_10] : memref<2x16x256xf32, #tpu.memory_space<vmem>>, vector<1x16x256xf32>
    %14 = vector.shape_cast %13 : vector<1x16x256xf32> to vector<16x256xf32>
    %15 = arith.addf %14, %12 : vector<16x256xf32>
    %c0_11 = arith.constant 0 : index
    %c0_12 = arith.constant 0 : index
    %c0_13 = arith.constant 0 : index
    %16 = vector.load %arg6[%c0_11, %c0_12, %c0_13] : memref<2x16x256xf32, #tpu.memory_space<vmem>>, vector<1x16x256xf32>
    %17 = vector.shape_cast %16 : vector<1x16x256xf32> to vector<16x256xf32>
    %18 = vector.shape_cast %15 : vector<16x256xf32> to vector<1x16x256xf32>
    tpu.vector_store %arg6[%c0_11, %c0_12, %c0_13], %18 {strides = array<i32>} : memref<2x16x256xf32, #tpu.memory_space<vmem>>, vector<1x16x256xf32>,
    %c1 = arith.constant 1 : index
    %c0_14 = arith.constant 0 : index
    %c0_15 = arith.constant 0 : index
    %19 = vector.load %arg2[%c1, %c0_14, %c0_15] : memref<2x4x256xf32, #tpu.memory_space<vmem>>, vector<1x4x256xf32>
    %20 = vector.shape_cast %19 : vector<1x4x256xf32> to vector<4x256xf32>
    %cst_16 = arith.constant dense<0.000000e+00> : vector<16x256xf32>
    %21 = tpu.matmul %3, %20, %cst_16 {dimension_numbers = #tpu.dot_dimension_numbers<[1], [0], [0], [1], [0, 0, 1, 1], [], []>} : vector<16x4xf32>, vector<4x256xf32>, vector<16x256xf32> -> vector<16x256xf32>
    %22 = vector.broadcast %5 : vector<16x1xf32> to vector<16x256xf32>
    %23 = arith.addf %21, %22 : vector<16x256xf32>
    %cst_17 = arith.constant 0.000000e+00 : f32
    %24 = vector.broadcast %cst_17 : f32 to vector<16x256xf32>
    %25 = arith.maximumf %23, %24 : vector<16x256xf32>
    %c1_18 = arith.constant 1 : index
    %c0_19 = arith.constant 0 : index
    %c0_20 = arith.constant 0 : index
    %26 = vector.load %arg6[%c1_18, %c0_19, %c0_20] : memref<2x16x256xf32, #tpu.memory_space<vmem>>, vector<1x16x256xf32>
    %27 = vector.shape_cast %26 : vector<1x16x256xf32> to vector<16x256xf32>
    %28 = arith.addf %27, %25 : vector<16x256xf32>
    %c1_21 = arith.constant 1 : index
    %c0_22 = arith.constant 0 : index
    %c0_23 = arith.constant 0 : index
    %29 = vector.load %arg6[%c1_21, %c0_22, %c0_23] : memref<2x16x256xf32, #tpu.memory_space<vmem>>, vector<1x16x256xf32>
    %30 = vector.shape_cast %29 : vector<1x16x256xf32> to vector<16x256xf32>
    %31 = vector.shape_cast %28 : vector<16x256xf32> to vector<1x16x256xf32>
    tpu.vector_store %arg6[%c1_21, %c0_22, %c0_23], %31 {strides = array<i32>} : memref<2x16x256xf32, #tpu.memory_space<vmem>>, vector<1x16x256xf32>,
    %c0_i32_24 = arith.constant 0 : i32
    %32 = arith.cmpi eq, %arg1, %c0_i32_24 : i32
    %33 = arith.extui %32 : i1 to i32
    %c0_i32_25 = arith.constant 0 : i32
    %34 = arith.cmpi ne, %33, %c0_i32_25 : i32
    scf.if %34 {
      %c0_26 = arith.constant 0 : index
      %c0_27 = arith.constant 0 : index
      %c0_28 = arith.constant 0 : index
      %35 = vector.load %arg6[%c0_26, %c0_27, %c0_28] : memref<2x16x256xf32, #tpu.memory_space<vmem>>, vector<2x16x256xf32>
      %cst_29 = arith.constant dense<0.000000e+00> : vector<2x16xf32>
      %36 = vector.multi_reduction <add>, %35, %cst_29 [2] : vector<2x16x256xf32> to vector<2x16xf32>
      %37 = vector.shape_cast %36 : vector<2x16xf32> to vector<2x1x16xf32>
      %c0_30 = arith.constant 0 : index
      %c0_31 = arith.constant 0 : index
      %c0_32 = arith.constant 0 : index
      %38 = vector.load %arg5[%c0_30, %c0_31, %c0_32] : memref<2x1x16xf32, #tpu.memory_space<vmem>>, vector<2x1x16xf32>
      tpu.vector_store %arg5[%c0_30, %c0_31, %c0_32], %37 {strides = array<i32>} : memref<2x1x16xf32, #tpu.memory_space<vmem>>, vector<2x1x16xf32>,
    } else {
    }
    return
  }
  func.func @transform_0(%arg0: i32, %arg1: i32) -> (i32, i32, i32) {
    %c0_i32 = arith.constant 0 : i32
    %c0_i32_0 = arith.constant 0 : i32
    return %arg0, %c0_i32, %arg1 : i32, i32, i32
  }
  func.func @transform_1(%arg0: i32, %arg1: i32) -> (i32, i32) {
    %c0_i32 = arith.constant 0 : i32
    %c0_i32_0 = arith.constant 0 : i32
    %c0_i32_1 = arith.constant 0 : i32
    return %c0_i32, %c0_i32_0 : i32, i32
  }
  func.func @transform_2(%arg0: i32, %arg1: i32) -> (i32, i32) {
    %c0_i32 = arith.constant 0 : i32
    %c0_i32_0 = arith.constant 0 : i32
    %c0_i32_1 = arith.constant 0 : i32
    return %c0_i32, %c0_i32_0 : i32, i32
  }
  func.func @transform_3(%arg0: i32, %arg1: i32) -> (i32, i32, i32) {
    %c0_i32 = arith.constant 0 : i32
    %c0_i32_0 = arith.constant 0 : i32
    %c0_i32_1 = arith.constant 0 : i32
    return %arg0, %c0_i32, %c0_i32_0 : i32, i32, i32
  }
}

</mosaic_0001>

<llo_original>
// kernel: squeezenet_classifier_forward.1
$region0: #{squeezenet_classifier_forward.1}
  #allocation0 [shape = 'u32[]', space=smem, size = 0x4, offset = 0x4, fixed_abs, tag = 'smem constant byte address 0x4 - core index']
  #allocation1 [shape = 'u32[144,128]{1,0:T(1,128)}', space=vmem, size = 0x12000, scoped, tag = 'internal scratch']
  #allocation2 [shape = 'f32[2,16,256]{2,1,0:T(8,128)}', space=vmem, size = 0x8000, scoped, tag = 'scratch operand']
  %s0 = inlined_call_operand.vmem [shape: f32[2,4,256], index: 0, kind: input, shape index: {}]
  %s1 = inlined_call_operand.vmem [shape: f32[16,4], index: 1, kind: input, shape index: {}]
  %s2 = inlined_call_operand.vmem [shape: f32[1,16], index: 2, kind: input, shape index: {}]
  %s3 = inlined_call_operand.hbm [shape: f32[2,1,16], index: 3, kind: output, shape index: {}]
  %s4 = sld [smem:[#allocation0]]
  $region30: #{squeezenet_classifier_forward.1} parent=0
    _
  %s6 = ssub.s32 1, %s4
  %s7 = scalar_select 0, %s6, %s4
  $region1: #{squeezenet_classifier_forward.1} parent=0
    #allocation3 [shape = 'u8[1024]{0}', space=vmem, size = 0x400, scoped, tag = 'output window, operand 0, single buffered']
    #allocation4 [shape = 's32[1]{0}', space=sflag, size = 0x4, scoped, tag = 'scoped memory for squeezenet_classifier_forward.1']
    %8 = vsyncpa [#allocation4], 0
    // Predicated region
    $region2: #{squeezenet_classifier_forward.1} parent=1 // pred_check
      _
    $region3: #{squeezenet_classifier_forward.1} parent=1 // pred_check_branch
      %10 = sbr.rel (0) target = $region5
    $region4: #{squeezenet_classifier_forward.1} parent=1 // pred_region
      _
    $region5: #{squeezenet_classifier_forward.1} parent=1 // pred_fallthru
      _
    // Predicated region
    $region6: #{squeezenet_classifier_forward.1} parent=1 // pred_check
      _
    $region7: #{squeezenet_classifier_forward.1} parent=1 // pred_check_branch
      %12 = sbr.rel (0) target = $region9
    $region8: #{squeezenet_classifier_forward.1} parent=1 // pred_region
      _
    $region9: #{squeezenet_classifier_forward.1} parent=1 // pred_fallthru
      _
    // Predicated region
    $region10: #{squeezenet_classifier_forward.1} parent=1 // pred_check
      _
    $region11: #{squeezenet_classifier_forward.1} parent=1 // pred_check_branch
      %14 = sbr.rel (0) target = $region13
    $region12: #{squeezenet_classifier_forward.1} parent=1 // pred_region
      _
    $region13: #{squeezenet_classifier_forward.1} parent=1 // pred_fallthru
      _
    %p15 = scmp.eq.s32.totalorder 0, 0
    // Predicated region
    $region14: #{squeezenet_classifier_forward.1} parent=1 // pred_check
      %p16 = pneg %p15
    $region15: #{squeezenet_classifier_forward.1} parent=1 // pred_check_branch
      %18 = sbr.rel (%p16) target = $region17
    $region16: #{squeezenet_classifier_forward.1} parent=1 // pred_region
      %19 = vst [vmem:[#allocation2] sm:$0xff] 0.0
      %20 = vst [vmem:[#allocation2 + $0x8] sm:$0xff] 0.0
      %21 = vst [vmem:[#allocation2 + $0x10] sm:$0xff] 0.0
      %22 = vst [vmem:[#allocation2 + $0x18] sm:$0xff] 0.0
      %23 = vst [vmem:[#allocation2 + $0x20] sm:$0xff] 0.0
      %24 = vst [vmem:[#allocation2 + $0x28] sm:$0xff] 0.0
      %25 = vst [vmem:[#allocation2 + $0x30] sm:$0xff] 0.0
      %26 = vst [vmem:[#allocation2 + $0x38] sm:$0xff] 0.0
    $region17: #{squeezenet_classifier_forward.1} parent=1 // pred_fallthru
      _
    %v27 = vld [vmem:[%s1] sm:$0xff]
    %v28 = vld [vmem:[%s1 + $0x8] sm:$0xff]
    %v29 = vld [vmem:[%s2] sm:$0x1]
    %30 = vxpose.xlu0.b32.start [1/16] %v29, 128
    %31 = vxpose.xlu0.b32.cont [2/16] 0.0, 128
    %32 = vxpose.xlu0.b32.cont [3/16] 0.0, 128
    %33 = vxpose.xlu0.b32.cont [4/16] 0.0, 128
    %34 = vxpose.xlu0.b32.cont [5/16] 0.0, 128
    %35 = vxpose.xlu0.b32.cont [6/16] 0.0, 128
    %36 = vxpose.xlu0.b32.cont [7/16] 0.0, 128
    %37 = vxpose.xlu0.b32.cont [8/16] 0.0, 128
    %38 = vxpose.xlu0.b32.cont [9/16] 0.0, 128
    %39 = vxpose.xlu0.b32.cont [10/16] 0.0, 128
    %40 = vxpose.xlu0.b32.cont [11/16] 0.0, 128
    %41 = vxpose.xlu0.b32.cont [12/16] 0.0, 128
    %42 = vxpose.xlu0.b32.cont [13/16] 0.0, 128
    %43 = vxpose.xlu0.b32.cont [14/16] 0.0, 128
    %44 = vxpose.xlu0.b32.cont [15/16] 0.0, 128
    %45 = vxpose.xlu0.b32.end [16/16] 0.0, 128
    %v46 = vpop.trf.xlu0
    %v47 = vpop.trf.xlu0
    %v48 = vpop.trf.xlu0
    %v49 = vpop.trf.xlu0
    %v50 = vpop.trf.xlu0
    %v51 = vpop.trf.xlu0
    %v52 = vpop.trf.xlu0
    %v53 = vpop.trf.xlu0
    %v54 = vpop.trf.xlu0
    %v55 = vpop.trf.xlu0
    %v56 = vpop.trf.xlu0
    %v57 = vpop.trf.xlu0
    %v58 = vpop.trf.xlu0
    %v59 = vpop.trf.xlu0
    %v60 = vpop.trf.xlu0
    %v61 = vpop.trf.xlu0
    %v62 = vld [vmem:[%s0] sm:$0xff]
    %64 = vset.pattern.permute.xlu0 0
    %65 = vperm.xlu0 %64, %v46
    %v66 = vpop.permute.xlu0 %65
    %69 = vset.pattern.permute.xlu0 0
    %70 = vperm.xlu0 %69, %v47
    %v71 = vpop.permute.xlu0 %70
    %v74 = vcombine.high %v62, %v62
    %vm75 = vcmask 31744
    %v77 = vsel %vm75, %v27, 0
    %v80 = vsel %vm75, %v28, 0
    %vm82 = vcmask 1043456
    %v83 = vsel %vm82, %v62, 0
    %v85 = vsel %vm82, %v74, 0
    %87 = vmatprep.subr.mxu0 %v85
    %88 = vmatpush1.msra.mxu0 %v83
    %89 = vmatprep.subr.mxu0 0.0
    %90 = vmatpush1.msra.mxu0 0.0
    %91 = vmatprep.subr.mxu0 0.0
    %92 = vmatpush1.msra.mxu0 0.0
    %93 = vmatprep.subr.mxu0 0.0
    %94 = vmatpush1.msra.mxu0 0.0
    %95 = vmatprep.subr.mxu0 0.0
    %96 = vmatpush1.msra.mxu0 0.0
    %97 = vmatprep.subr.mxu0 0.0
    %98 = vmatpush1.msra.mxu0 0.0
    %99 = vmatprep.subr.mxu0 0.0
    %100 = vmatpush1.msra.mxu0 0.0
    %101 = vmatprep.subr.mxu0 0.0
    %102 = vmatpush1.msra.mxu0 0.0
    %103 = vmatprep.subr.mxu0 0.0
    %104 = vmatpush1.msra.mxu0 0.0
    %105 = vmatprep.subr.mxu0 0.0
    %106 = vmatpush1.msra.mxu0 0.0
    %107 = vmatprep.subr.mxu0 0.0
    %108 = vmatpush1.msra.mxu0 0.0
    %109 = vmatprep.subr.mxu0 0.0
    %110 = vmatpush1.msra.mxu0 0.0
    %111 = vmatprep.subr.mxu0 0.0
    %112 = vmatpush1.msra.mxu0 0.0
    %113 = vmatprep.subr.mxu0 0.0
    %114 = vmatpush1.msra.mxu0 0.0
    %115 = vmatprep.subr.mxu0 0.0
    %116 = vmatpush1.msra.mxu0 0.0
    %117 = vmatprep.subr.mxu0 0.0
    %118 = vmatpush1.msra.mxu0 0.0
    %119 = vmatprep.subr.mxu0 0.0
    %120 = vmatpush1.msra.mxu0 0.0
    %121 = vmatprep.subr.mxu0 0.0
    %122 = vmatpush1.msra.mxu0 0.0
    %123 = vmatprep.subr.mxu0 0.0
    %124 = vmatpush1.msra.mxu0 0.0
    %125 = vmatprep.subr.mxu0 0.0
    %126 = vmatpush1.msra.mxu0 0.0
    %127 = vmatprep.subr.mxu0 0.0
    %128 = vmatpush1.msra.mxu0 0.0
    %129 = vmatprep.subr.mxu0 0.0
    %130 = vmatpush1.msra.mxu0 0.0
    %131 = vmatprep.subr.mxu0 0.0
    %132 = vmatpush1.msra.mxu0 0.0
    %133 = vmatprep.subr.mxu0 0.0
    %134 = vmatpush1.msra.mxu0 0.0
    %135 = vmatprep.subr.mxu0 0.0
    %136 = vmatpush1.msra.mxu0 0.0
    %137 = vmatprep.subr.mxu0 0.0
    %138 = vmatpush1.msra.mxu0 0.0
    %139 = vmatprep.subr.mxu0 0.0
    %140 = vmatpush1.msra.mxu0 0.0
    %141 = vmatprep.subr.mxu0 0.0
    %142 = vmatpush1.msra.mxu0 0.0
    %143 = vmatprep.subr.mxu0 0.0
    %144 = vmatpush1.msra.mxu0 0.0
    %145 = vmatprep.subr.mxu0 0.0
    %146 = vmatpush1.msra.mxu0 0.0
    %147 = vmatprep.subr.mxu0 0.0
    %148 = vmatpush1.msra.mxu0 0.0
    %149 = vmatprep.subr.mxu0 0.0
    %150 = vmatpush1.msra.mxu0 0.0
    %151 = vmatprep.mubr.f32.mxu0 0.0
    %152 = vmatmul.mubr.f32.gmra.mrb[0].mxu0 %v77
    %v153 = vpop.f32.mrb[0].mxu0
    %v154 = vadd.f32 %v66, %v153
    %v155 = vpop.f32.mrb[0].mxu0
    %v156 = vadd.f32 %v66, %v155
    %157 = vmatprep.mubr.f32.mxu0 0.0
    %158 = vmatmul.mubr.f32.gmra.mrb[0].mxu0 %v80
    %v159 = vpop.f32.mrb[0].mxu0
    %v160 = vadd.f32 %v71, %v159
    %v161 = vpop.f32.mrb[0].mxu0
    %v162 = vadd.f32 %v71, %v161
    %163 = vdwg.mxu0
    %v164 = vmax.f32 %v154, 0.0
    %v165 = vmax.f32 %v156, 0.0
    %v166 = vmax.f32 %v160, 0.0
    %v167 = vmax.f32 %v162, 0.0
    %v168 = vld [vmem:[#allocation2] sm:$0xff]
    %v169 = vld [vmem:[#allocation2 + $0x8] sm:$0xff]
    %v170 = vld [vmem:[#allocation2 + $0x10] sm:$0xff]
    %v171 = vld [vmem:[#allocation2 + $0x18] sm:$0xff]
    %v172 = vadd.f32 %v168, %v164
    %v173 = vadd.f32 %v169, %v165
    %v174 = vadd.f32 %v170, %v166
    %v175 = vadd.f32 %v171, %v167
    %176 = vst [vmem:[#allocation2] sm:$0xff] %v172
    %177 = vst [vmem:[#allocation2 + $0x8] sm:$0xff] %v173
    %178 = vst [vmem:[#allocation2 + $0x10] sm:$0xff] %v174
    %179 = vst [vmem:[#allocation2 + $0x18] sm:$0xff] %v175
    %s180 = scalar_lea.vmem %s0, 8
    %v181 = vld [vmem:[%s180] sm:$0xff]
    %v183 = vcombine.high %v181, %v181
    %v184 = vsel %vm82, %v181, 0
    %v186 = vsel %vm82, %v183, 0
    %188 = vmatprep.subr.mxu0 %v186
    %189 = vmatpush1.msra.mxu0 %v184
    %190 = vmatprep.subr.mxu0 0.0
    %191 = vmatpush1.msra.mxu0 0.0
    %192 = vmatprep.subr.mxu0 0.0
    %193 = vmatpush1.msra.mxu0 0.0
    %194 = vmatprep.subr.mxu0 0.0
    %195 = vmatpush1.msra.mxu0 0.0
    %196 = vmatprep.subr.mxu0 0.0
    %197 = vmatpush1.msra.mxu0 0.0
    %198 = vmatprep.subr.mxu0 0.0
    %199 = vmatpush1.msra.mxu0 0.0
    %200 = vmatprep.subr.mxu0 0.0
    %201 = vmatpush1.msra.mxu0 0.0
    %202 = vmatprep.subr.mxu0 0.0
    %203 = vmatpush1.msra.mxu0 0.0
    %204 = vmatprep.subr.mxu0 0.0
    %205 = vmatpush1.msra.mxu0 0.0
    %206 = vmatprep.subr.mxu0 0.0
    %207 = vmatpush1.msra.mxu0 0.0
    %208 = vmatprep.subr.mxu0 0.0
    %209 = vmatpush1.msra.mxu0 0.0
    %210 = vmatprep.subr.mxu0 0.0
    %211 = vmatpush1.msra.mxu0 0.0
    %212 = vmatprep.subr.mxu0 0.0
    %213 = vmatpush1.msra.mxu0 0.0
    %214 = vmatprep.subr.mxu0 0.0
    %215 = vmatpush1.msra.mxu0 0.0
    %216 = vmatprep.subr.mxu0 0.0
    %217 = vmatpush1.msra.mxu0 0.0
    %218 = vmatprep.subr.mxu0 0.0
    %219 = vmatpush1.msra.mxu0 0.0
    %220 = vmatprep.subr.mxu0 0.0
    %221 = vmatpush1.msra.mxu0 0.0
    %222 = vmatprep.subr.mxu0 0.0
    %223 = vmatpush1.msra.mxu0 0.0
    %224 = vmatprep.subr.mxu0 0.0
    %225 = vmatpush1.msra.mxu0 0.0
    %226 = vmatprep.subr.mxu0 0.0
    %227 = vmatpush1.msra.mxu0 0.0
    %228 = vmatprep.subr.mxu0 0.0
    %229 = vmatpush1.msra.mxu0 0.0
    %230 = vmatprep.subr.mxu0 0.0
    %231 = vmatpush1.msra.mxu0 0.0
    %232 = vmatprep.subr.mxu0 0.0
    %233 = vmatpush1.msra.mxu0 0.0
    %234 = vmatprep.subr.mxu0 0.0
    %235 = vmatpush1.msra.mxu0 0.0
    %236 = vmatprep.subr.mxu0 0.0
    %237 = vmatpush1.msra.mxu0 0.0
    %238 = vmatprep.subr.mxu0 0.0
    %239 = vmatpush1.msra.mxu0 0.0
    %240 = vmatprep.subr.mxu0 0.0
    %241 = vmatpush1.msra.mxu0 0.0
    %242 = vmatprep.subr.mxu0 0.0
    %243 = vmatpush1.msra.mxu0 0.0
    %244 = vmatprep.subr.mxu0 0.0
    %245 = vmatpush1.msra.mxu0 0.0
    %246 = vmatprep.subr.mxu0 0.0
    %247 = vmatpush1.msra.mxu0 0.0
    %248 = vmatprep.subr.mxu0 0.0
    %249 = vmatpush1.msra.mxu0 0.0
    %250 = vmatprep.subr.mxu0 0.0
    %251 = vmatpush1.msra.mxu0 0.0
    %252 = vmatprep.mubr.f32.mxu0 0.0
    %253 = vmatmul.mubr.f32.gmra.mrb[0].mxu0 %v77
    %v254 = vpop.f32.mrb[0].mxu0
    %v255 = vadd.f32 %v66, %v254
    %v256 = vpop.f32.mrb[0].mxu0
    %v257 = vadd.f32 %v66, %v256
    %258 = vmatprep.mubr.f32.mxu0 0.0
    %259 = vmatmul.mubr.f32.gmra.mrb[0].mxu0 %v80
    %v260 = vpop.f32.mrb[0].mxu0
    %v261 = vadd.f32 %v71, %v260
    %v262 = vpop.f32.mrb[0].mxu0
    %v263 = vadd.f32 %v71, %v262
    %264 = vdwg.mxu0
    %v265 = vmax.f32 %v255, 0.0
    %v266 = vmax.f32 %v257, 0.0
    %v267 = vmax.f32 %v261, 0.0
    %v268 = vmax.f32 %v263, 0.0
    %s269 = scalar_lea.vmem [#allocation2], 32
    %v270 = vld [vmem:[%s269] sm:$0xff]
    %v271 = vld [vmem:[%s269 + $0x8] sm:$0xff]
    %v272 = vld [vmem:[%s269 + $0x10] sm:$0xff]
    %v273 = vld [vmem:[%s269 + $0x18] sm:$0xff]
    %v274 = vadd.f32 %v270, %v265
    %v275 = vadd.f32 %v271, %v266
    %v276 = vadd.f32 %v272, %v267
    %v277 = vadd.f32 %v273, %v268
    %278 = vst [vmem:[%s269] sm:$0xff] %v274
    %279 = vst [vmem:[%s269 + $0x8] sm:$0xff] %v275
    %280 = vst [vmem:[%s269 + $0x10] sm:$0xff] %v276
    %281 = vst [vmem:[%s269 + $0x18] sm:$0xff] %v277
    // Predicated region
    $region18: #{squeezenet_classifier_forward.1} parent=1 // pred_check
      %p282 = pneg %p15
    $region19: #{squeezenet_classifier_forward.1} parent=1 // pred_check_branch
      %284 = sbr.rel (%p282) target = $region21
    $region20: #{squeezenet_classifier_forward.1} parent=1 // pred_region
      %v285 = vld [vmem:[#allocation2] sm:$0xff]
      %v286 = vld [vmem:[#allocation2 + $0x8] sm:$0xff]
      %v287 = vld [vmem:[#allocation2 + $0x10] sm:$0xff]
      %v288 = vld [vmem:[#allocation2 + $0x18] sm:$0xff]
      %v289 = vld [vmem:[#allocation2 + $0x20] sm:$0xff]
      %v290 = vld [vmem:[#allocation2 + $0x28] sm:$0xff]
      %v291 = vld [vmem:[#allocation2 + $0x30] sm:$0xff]
      %v292 = vld [vmem:[#allocation2 + $0x38] sm:$0xff]
      %v293 = vadd.f32 %v285, %v286
      %294 = vadd.xlane.f32.xlu0 %v293
      %v295 = vpop.xlane.xlu0 %294
      %v296 = vadd.f32 %v287, %v288
      %297 = vadd.xlane.f32.xlu0 %v296
      %v298 = vpop.xlane.xlu0 %297
      %v299 = vadd.f32 %v289, %v290
      %300 = vadd.xlane.f32.xlu0 %v299
      %v301 = vpop.xlane.xlu0 %300
      %v302 = vadd.f32 %v291, %v292
      %303 = vadd.xlane.f32.xlu0 %v302
      %v304 = vpop.xlane.xlu0 %303
      %v309 = vlaneseq
      %v310 = vand.u32 %v309, 127
      %v311 = vlaneseq
      %v312 = vshrl.u32 %v311, 7
      %v313 = vsub.s32 %v310, %v312
      %v314 = vrot.slane %v295, %v313
      %v315 = vadd.s32 %v310, 4294967288
      %v316 = vlaneseq
      %v317 = vshrl.u32 %v316, 7
      %v318 = vsub.s32 %v315, %v317
      %v319 = vrot.slane %v298, %v318
      %vm320 = vcmask 130112
      %v321 = vsel %vm320, %v319, %v314
      %v322 = vlaneseq
      %v323 = vshrl.u32 %v322, 7
      %v324 = vsub.s32 %v310, %v323
      %v325 = vrot.slane %v301, %v324
      %v326 = vlaneseq
      %v327 = vshrl.u32 %v326, 7
      %v328 = vsub.s32 %v315, %v327
      %v329 = vrot.slane %v304, %v328
      %v330 = vsel %vm320, %v329, %v325
      %vm333 = vcmask 122880
      %334 = vst.msk [vmem:[#allocation3] sm:$0x1] %vm333, %v321
      %335 = vst.msk [vmem:[#allocation3 + $0x1] sm:$0x1] %vm333, %v330
    $region21: #{squeezenet_classifier_forward.1} parent=1 // pred_fallthru
      _
    // Predicated region
    $region22: #{squeezenet_classifier_forward.1} parent=1 // pred_check
      _
    $region23: #{squeezenet_classifier_forward.1} parent=1 // pred_check_branch
      %337 = sbr.rel (0) target = $region25
    $region24: #{squeezenet_classifier_forward.1} parent=1 // pred_region
      %s339 = ssub.s32 32, 32
      %340 = vsyncadd [#allocation4], %s339
      %s341 = sshll.u32 [#allocation3], 4
      %s342 = int_to_ptr.vmem [resolvable:$true] %s341
      %347 = dma.vmem_to_hbm [thread:$0]  %s342, 32, %s3, [#allocation4], 16, 16, 1
    $region25: #{squeezenet_classifier_forward.1} parent=1 // pred_fallthru
      _
    // Predicated region
    $region26: #{squeezenet_classifier_forward.1} parent=1 // pred_check
      _
    $region27: #{squeezenet_classifier_forward.1} parent=1 // pred_check_branch
      %349 = sbr.rel (0) target = $region29
    $region28: #{squeezenet_classifier_forward.1} parent=1 // pred_region
      %350 = dma.done [#allocation4], 32
    $region29: #{squeezenet_classifier_forward.1} parent=1 // pred_fallthru
      _
    %351 = vsyncpa [#allocation4], 1

</llo_original>
